<compile_context>
chip_gen: v5e
topology: v5e:2x2
jax: 0.10.0
libtpu: 0.0.40
codegen_flags: <defaults>
</compile_context>

<pallas_src>
import jax
import jax.numpy as jnp
from jax import lax
from jax.experimental import pallas as pl
from jax.experimental.pallas import tpu as pltpu


def _loss_stats_kernel(logits_ref, tgt_ref, msk_ref, nout_ref, pos_ref, out_ref):
    """One row-tile of the fused loss reduction.

    logits_ref : (TILE_R, C)  original dtype (bf16/f32), cast to f32 in-register
    tgt_ref    : (TILE_R, 1)  int32, 0 where ignored (unmasked / padding / ignore_index==0)
    msk_ref    : (TILE_R, 1)  int32 node_mask (1 = row participates in the L1 loss)
    nout_ref   : (TILE_R, 3)  predicted positions
    pos_ref    : (TILE_R, 3)  target positions
    out_ref    : (1, 8, 128)  partial stats for this tile:
                 sublane 0 -> ce_loss_sum, 1 -> ce_valid_count,
                 sublane 2 -> l1_abs_sum,  3.. -> node_mask_count
    """
    logits = logits_ref[...].astype(jnp.float32)            # (TILE_R, C)
    tgt = tgt_ref[...]                                       # (TILE_R, 1) int32
    msk = msk_ref[...] != 0                                  # (TILE_R, 1) bool
    nout = nout_ref[...].astype(jnp.float32)                 # (TILE_R, 3)
    pos = pos_ref[...].astype(jnp.float32)                   # (TILE_R, 3)

    # Cross entropy: -log_softmax(logits)[tgt], gather via one-hot class-lane reduction.
    m = jnp.max(logits, axis=-1, keepdims=True)
    z = logits - m
    lse = jnp.log(jnp.sum(jnp.exp(z), axis=-1, keepdims=True))
    cls_iota = lax.broadcasted_iota(jnp.int32, logits.shape, 1)
    onehot = (cls_iota == tgt).astype(jnp.float32)
    logp_t = jnp.sum(z * onehot, axis=-1, keepdims=True) - lse      # (TILE_R, 1)

    # ignore_index == 0 (the node_mask is already folded into tgt by the wrapper).
    # Select (not multiply) so garbage in a partial boundary logits block cannot leak.
    valid = tgt != 0
    ce_sum = jnp.sum(jnp.where(valid, -logp_t, 0.0))
    ce_cnt = jnp.sum(valid.astype(jnp.float32))

    # L1 over masked rows, all 3 coordinates.
    l1_sum = jnp.sum(jnp.where(msk, jnp.abs(nout - pos), 0.0))
    msk_cnt = jnp.sum(msk.astype(jnp.float32))

    row = lax.broadcasted_iota(jnp.int32, (8, 128), 0)
    out_ref[0] = jnp.where(row == 0, ce_sum,
                           jnp.where(row == 1, ce_cnt,
                                     jnp.where(row == 2, l1_sum, msk_cnt)))


def _pick_tile_rows(n_rows, n_classes, itemsize, budget_bytes=2 << 20):
    """Largest row tile whose logits block stays under `budget_bytes` (the pipeline
    double-buffers it), capped at 2048 rows so the small side streams also fit v5e's
    16 MiB / v7x's 32 MiB default scoped VMEM."""
    t = max(1, budget_bytes // max(1, n_classes * itemsize))
    t = min(t, 2048)
    if t >= n_rows:
        return n_rows                      # full-extent block: always layout-legal
    return max(16, (t // 16) * 16)         # sublane-aligned for f32 and packed bf16


def mae3d_criterions_pp_forward(logits, node_output, x, pos, node_mask,
                                atom_loss_coeff, pos_loss_coeff):
    """JAX/Pallas equivalent of MAE3dCriterionsPP.forward.

    logits      [B, T+1, C]   (row 0 per batch is the dropped leading token)
    node_output [B, T, 3]
    x           [B, T, F]     (x[:, :, 0] = atom-type targets)
    pos         [B, T, 3]
    node_mask   [B, T, 1]
    """
    B, Tp, C = logits.shape

    # --- tiny per-row glue in plain JAX (all O(B*T), negligible next to logits) ---
    mask = node_mask[..., 0] != 0                                        # [B, T]
    tgt = jnp.where(mask, x[:, :, 0].astype(jnp.int32), 0)               # fold mask into ignore_index
    # Align with logits' token axis: prepend a zero row instead of slicing the big logits.
    tgt_p = jnp.pad(tgt, ((0, 0), (1, 0)))                               # [B, T+1]
    msk_p = jnp.pad(mask.astype(jnp.int32), ((0, 0), (1, 0)))            # [B, T+1]
    nout_p = jnp.pad(node_output, ((0, 0), (1, 0), (0, 0)))              # [B, T+1, 3]
    pos_p = jnp.pad(pos, ((0, 0), (1, 0), (0, 0)))                       # [B, T+1, 3]

    # --- flatten rows (free reshape) and tile them for the streaming reduction ---
    R = B * Tp
    logits2 = logits.reshape(R, C)            # original dtype; NO f32 upcast in HBM
    tile_r = _pick_tile_rows(R, C, jnp.dtype(logits.dtype).itemsize)
    nt = -(-R // tile_r)
    r_pad = nt * tile_r - R

    def _rows(a, width):
        a = a.reshape(R, width)
        if r_pad:                              # pad the small arrays only; logits stays as-is
            a = jnp.pad(a, ((0, r_pad), (0, 0)))
        return a

    tgt_r = _rows(tgt_p, 1)
    msk_r = _rows(msk_p, 1)
    nout_r = _rows(nout_p, 3)
    pos_r = _rows(pos_p, 3)

    stats = pl.pallas_call(
        _loss_stats_kernel,
        out_shape=jax.ShapeDtypeStruct((nt, 8, 128), jnp.float32),
        grid=(nt,),
        in_specs=[
            pl.BlockSpec((tile_r, C), lambda t: (t, 0)),   # class axis never tiled
            pl.BlockSpec((tile_r, 1), lambda t: (t, 0)),
            pl.BlockSpec((tile_r, 1), lambda t: (t, 0)),
            pl.BlockSpec((tile_r, 3), lambda t: (t, 0)),
            pl.BlockSpec((tile_r, 3), lambda t: (t, 0)),
        ],
        out_specs=pl.BlockSpec((1, 8, 128), lambda t: (t, 0, 0)),
        compiler_params=pltpu.CompilerParams(dimension_semantics=("parallel",)),
    )(logits2, tgt_r, msk_r, nout_r, pos_r)

    # --- combine per-tile partials (tiny) ---
    s = jnp.sum(stats, axis=0)                                 # (8, 128)
    ce_sum, ce_cnt = s[0, 0], s[1, 0]
    l1_sum, msk_cnt = s[2, 0], s[3, 0]

    loss1 = (ce_sum / ce_cnt) * atom_loss_coeff                # CE(mean, ignore_index=0)
    # L1Loss(reduction='mean') is a scalar; the torch .sum(dim=-1) on it is a no-op.
    loss2 = (l1_sum / (3.0 * msk_cnt)) * pos_loss_coeff
    return loss1 + loss2


def _reference(logits, node_output, x, pos, node_mask, atom_loss_coeff, pos_loss_coeff):
    """Pure-JAX reference mirroring the PyTorch semantics (for correctness checking)."""
    mask = node_mask[..., 0] != 0
    tgt = x[:, :, 0].astype(jnp.int32)
    lg = logits[:, 1:, :].astype(jnp.float32)
    logp = jax.nn.log_softmax(lg, axis=-1)
    lt = jnp.take_along_axis(logp, tgt[..., None], axis=-1)[..., 0]
    valid = mask & (tgt != 0)
    loss1 = (jnp.sum(jnp.where(valid, -lt, 0.0))
             / jnp.sum(valid).astype(jnp.float32)) * atom_loss_coeff
    diff = jnp.abs(node_output.astype(jnp.float32) - pos.astype(jnp.float32))
    loss2 = (jnp.sum(jnp.where(mask[..., None], diff, 0.0))
             / (3.0 * jnp.sum(mask).astype(jnp.float32))) * pos_loss_coeff
    return loss1 + loss2


if __name__ == "__main__":
    # Small, module-consistent shapes: B=2 molecules, T=15 atoms (+1 leading token in
    # logits), C=32 atom types, 3-D positions.
    B, T, C = 2, 15, 32
    ATOM_LOSS_COEFF, POS_LOSS_COEFF = 1.0, 0.2

    key = jax.random.PRNGKey(0)
    k1, k2, k3, k4, k5 = jax.random.split(key, 5)
    x_tok = jax.random.randint(k1, (B, T, 1), 0, C, dtype=jnp.int32)      # includes 0 (ignored)
    node_mask = (jax.random.uniform(k2, (B, T, 1)) < 0.6).astype(jnp.int32)
    # Guarantee at least one valid CE target and one masked row (avoid 0/0, mirrors torch).
    x_tok = x_tok.at[0, 0, 0].set(3)
    node_mask = node_mask.at[0, 0, 0].set(1)
    pos = jax.random.normal(k3, (B, T, 3), dtype=jnp.float32)
    logits = jax.random.normal(k4, (B, T + 1, C), dtype=jnp.float32).astype(jnp.bfloat16)
    node_output = jax.random.normal(k5, (B, T, 3), dtype=jnp.float32).astype(jnp.bfloat16)

    fwd = jax.jit(mae3d_criterions_pp_forward)
    loss = fwd(logits, node_output, x_tok, pos, node_mask, ATOM_LOSS_COEFF, POS_LOSS_COEFF)
    jax.block_until_ready(loss)

    ref = _reference(logits, node_output, x_tok, pos, node_mask,
                     ATOM_LOSS_COEFF, POS_LOSS_COEFF)
    assert bool(jnp.isfinite(loss)), float(loss)
    assert jnp.allclose(loss, ref, rtol=2e-3, atol=2e-3), (float(loss), float(ref))

    print("KERNEL_OK")
</pallas_src>

<mosaic_0001>
module attributes {stable_mosaic.version = 11 : i64} {
  func.func @_loss_stats_kernel(%arg0: i32, %arg1: memref<32x32xbf16, #tpu.memory_space<vmem>>, %arg2: memref<32x1xi32, #tpu.memory_space<vmem>>, %arg3: memref<32x1xi32, #tpu.memory_space<vmem>>, %arg4: memref<32x3xbf16, #tpu.memory_space<vmem>>, %arg5: memref<32x3xf32, #tpu.memory_space<vmem>>, %arg6: memref<1x8x128xf32, #tpu.memory_space<vmem>>) attributes {dimension_semantics = [#tpu.dimension_semantics<parallel>], iteration_bounds = array<i64: 1>, scalar_prefetch = 0 : i64, scratch_operands = 0 : i64, tpu.core_type = #tpu.core_type<tc>, window_params = [{transform_indices = @transform_0, window_bounds = array<i64: 32, 32>}, {transform_indices = @transform_1, window_bounds = array<i64: 32, 1>}, {transform_indices = @transform_2, window_bounds = array<i64: 32, 1>}, {transform_indices = @transform_3, window_bounds = array<i64: 32, 3>}, {transform_indices = @transform_4, window_bounds = array<i64: 32, 3>}, {transform_indices = @transform_5, window_bounds = array<i64: 1, 8, 128>}]} {
    %c0 = arith.constant 0 : index
    %c0_0 = arith.constant 0 : index
    %0 = vector.load %arg1[%c0, %c0_0] : memref<32x32xbf16, #tpu.memory_space<vmem>>, vector<32x32xbf16>
    %1 = arith.extf %0 : vector<32x32xbf16> to vector<32x32xf32>
    %c0_1 = arith.constant 0 : index
    %c0_2 = arith.constant 0 : index
    %2 = vector.load %arg2[%c0_1, %c0_2] : memref<32x1xi32, #tpu.memory_space<vmem>>, vector<32x1xi32>
    %c0_3 = arith.constant 0 : index
    %c0_4 = arith.constant 0 : index
    %3 = vector.load %arg3[%c0_3, %c0_4] : memref<32x1xi32, #tpu.memory_space<vmem>>, vector<32x1xi32>
    %c0_i32 = arith.constant 0 : i32
    %4 = vector.broadcast %c0_i32 : i32 to vector<32x1xi32>
    %5 = arith.cmpi ne, %3, %4 : vector<32x1xi32>
    %c0_5 = arith.constant 0 : index
    %c0_6 = arith.constant 0 : index
    %6 = vector.load %arg4[%c0_5, %c0_6] : memref<32x3xbf16, #tpu.memory_space<vmem>>, vector<32x3xbf16>
    %7 = arith.extf %6 : vector<32x3xbf16> to vector<32x3xf32>
    %c0_7 = arith.constant 0 : index
    %c0_8 = arith.constant 0 : index
    %8 = vector.load %arg5[%c0_7, %c0_8] : memref<32x3xf32, #tpu.memory_space<vmem>>, vector<32x3xf32>
    %cst = arith.constant dense<0xFF800000> : vector<32xf32>
    %9 = vector.multi_reduction <maximumf>, %1, %cst [1] : vector<32x32xf32> to vector<32xf32>
    %10 = vector.shape_cast %9 : vector<32xf32> to vector<32x1xf32>
    %11 = vector.broadcast %10 : vector<32x1xf32> to vector<32x32xf32>
    %12 = arith.subf %1, %11 : vector<32x32xf32>
    %13 = math.exp %12 : vector<32x32xf32>
    %cst_9 = arith.constant dense<0.000000e+00> : vector<32xf32>
    %14 = vector.multi_reduction <add>, %13, %cst_9 [1] : vector<32x32xf32> to vector<32xf32>
    %15 = vector.shape_cast %14 : vector<32xf32> to vector<32x1xf32>
    %16 = math.log %15 : vector<32x1xf32>
    %17 = tpu.iota {dimensions = array<i32: 1>} : vector<32x32xi32>
    %18 = vector.broadcast %2 : vector<32x1xi32> to vector<32x32xi32>
    %19 = arith.cmpi eq, %17, %18 : vector<32x32xi32>
    %20 = arith.extui %19 : vector<32x32xi1> to vector<32x32xi32>
    %21 = arith.sitofp %20 : vector<32x32xi32> to vector<32x32xf32>
    %22 = arith.mulf %12, %21 : vector<32x32xf32>
    %cst_10 = arith.constant dense<0.000000e+00> : vector<32xf32>
    %23 = vector.multi_reduction <add>, %22, %cst_10 [1] : vector<32x32xf32> to vector<32xf32>
    %24 = vector.shape_cast %23 : vector<32xf32> to vector<32x1xf32>
    %25 = arith.subf %24, %16 : vector<32x1xf32>
    %c0_i32_11 = arith.constant 0 : i32
    %26 = vector.broadcast %c0_i32_11 : i32 to vector<32x1xi32>
    %27 = arith.cmpi ne, %2, %26 : vector<32x1xi32>
    %cst_12 = arith.constant 0.000000e+00 : f32
    %28 = vector.broadcast %cst_12 : f32 to vector<32x1xf32>
    %29 = arith.subf %28, %25 : vector<32x1xf32>
    %cst_13 = arith.constant 0.000000e+00 : f32
    %30 = vector.broadcast %cst_13 : f32 to vector<32x1xf32>
    %31 = arith.select %27, %29, %30 : vector<32x1xi1>, vector<32x1xf32>
    %32 = vector.shape_cast %31 : vector<32x1xf32> to vector<1x32x1xf32>
    %cst_14 = arith.constant dense<0.000000e+00> : vector<1xf32>
    %33 = vector.multi_reduction <add>, %32, %cst_14 [1, 2] : vector<1x32x1xf32> to vector<1xf32>
    %34 = vector.shape_cast %33 : vector<1xf32> to vector<1x1x1xf32>
    %35 = vector.extract %34[0, 0, 0] : f32 from vector<1x1x1xf32>
    %36 = arith.extui %27 : vector<32x1xi1> to vector<32x1xi32>
    %37 = arith.sitofp %36 : vector<32x1xi32> to vector<32x1xf32>
    %38 = vector.shape_cast %37 : vector<32x1xf32> to vector<1x32x1xf32>
    %cst_15 = arith.constant dense<0.000000e+00> : vector<1xf32>
    %39 = vector.multi_reduction <add>, %38, %cst_15 [1, 2] : vector<1x32x1xf32> to vector<1xf32>
    %40 = vector.shape_cast %39 : vector<1xf32> to vector<1x1x1xf32>
    %41 = vector.extract %40[0, 0, 0] : f32 from vector<1x1x1xf32>
    %42 = arith.subf %7, %8 : vector<32x3xf32>
    %43 = math.absf %42 : vector<32x3xf32>
    %cst_16 = arith.constant 0.000000e+00 : f32
    %44 = vector.shape_cast %5 : vector<32x1xi1> to vector<32x1xi1>
    %45 = vector.broadcast %44 : vector<32x1xi1> to vector<32x3xi1>
    %46 = vector.broadcast %cst_16 : f32 to vector<32x3xf32>
    %47 = arith.select %45, %43, %46 : vector<32x3xi1>, vector<32x3xf32>
    %48 = vector.shape_cast %47 : vector<32x3xf32> to vector<1x32x3xf32>
    %cst_17 = arith.constant dense<0.000000e+00> : vector<1xf32>
    %49 = vector.multi_reduction <add>, %48, %cst_17 [1, 2] : vector<1x32x3xf32> to vector<1xf32>
    %50 = vector.shape_cast %49 : vector<1xf32> to vector<1x1x1xf32>
    %51 = vector.extract %50[0, 0, 0] : f32 from vector<1x1x1xf32>
    %52 = arith.extui %5 : vector<32x1xi1> to vector<32x1xi32>
    %53 = arith.sitofp %52 : vector<32x1xi32> to vector<32x1xf32>
    %54 = vector.shape_cast %53 : vector<32x1xf32> to vector<1x32x1xf32>
    %cst_18 = arith.constant dense<0.000000e+00> : vector<1xf32>
    %55 = vector.multi_reduction <add>, %54, %cst_18 [1, 2] : vector<1x32x1xf32> to vector<1xf32>
    %56 = vector.shape_cast %55 : vector<1xf32> to vector<1x1x1xf32>
    %57 = vector.extract %56[0, 0, 0] : f32 from vector<1x1x1xf32>
    %58 = tpu.iota {dimensions = array<i32: 0>} : vector<8x128xi32>
    %c0_i32_19 = arith.constant 0 : i32
    %59 = vector.broadcast %c0_i32_19 : i32 to vector<8x128xi32>
    %60 = arith.cmpi eq, %58, %59 : vector<8x128xi32>
    %c1_i32 = arith.constant 1 : i32
    %61 = vector.broadcast %c1_i32 : i32 to vector<8x128xi32>
    %62 = arith.cmpi eq, %58, %61 : vector<8x128xi32>
    %c2_i32 = arith.constant 2 : i32
    %63 = vector.broadcast %c2_i32 : i32 to vector<8x128xi32>
    %64 = arith.cmpi eq, %58, %63 : vector<8x128xi32>
    %65 = vector.broadcast %51 : f32 to vector<8x128xf32>
    %66 = vector.broadcast %57 : f32 to vector<8x128xf32>
    %67 = arith.select %64, %65, %66 : vector<8x128xi1>, vector<8x128xf32>
    %68 = vector.broadcast %41 : f32 to vector<8x128xf32>
    %69 = arith.select %62, %68, %67 : vector<8x128xi1>, vector<8x128xf32>
    %70 = vector.broadcast %35 : f32 to vector<8x128xf32>
    %71 = arith.select %60, %70, %69 : vector<8x128xi1>, vector<8x128xf32>
    %c0_20 = arith.constant 0 : index
    %c0_21 = arith.constant 0 : index
    %c0_22 = arith.constant 0 : index
    %72 = vector.load %arg6[%c0_20, %c0_21, %c0_22] : memref<1x8x128xf32, #tpu.memory_space<vmem>>, vector<1x8x128xf32>
    %73 = vector.shape_cast %72 : vector<1x8x128xf32> to vector<8x128xf32>
    %74 = vector.shape_cast %71 : vector<8x128xf32> to vector<1x8x128xf32>
    tpu.vector_store %arg6[%c0_20, %c0_21, %c0_22], %74 {strides = array<i32>} : memref<1x8x128xf32, #tpu.memory_space<vmem>>, vector<1x8x128xf32>,
    return
  }
  func.func @transform_0(%arg0: i32) -> (i32, i32) {
    %c0_i32 = arith.constant 0 : i32
    %c0_i32_0 = arith.constant 0 : i32
    return %arg0, %c0_i32 : i32, i32
  }
  func.func @transform_1(%arg0: i32) -> (i32, i32) {
    %c0_i32 = arith.constant 0 : i32
    %c0_i32_0 = arith.constant 0 : i32
    return %arg0, %c0_i32 : i32, i32
  }
  func.func @transform_2(%arg0: i32) -> (i32, i32) {
    %c0_i32 = arith.constant 0 : i32
    %c0_i32_0 = arith.constant 0 : i32
    return %arg0, %c0_i32 : i32, i32
  }
  func.func @transform_3(%arg0: i32) -> (i32, i32) {
    %c0_i32 = arith.constant 0 : i32
    %c0_i32_0 = arith.constant 0 : i32
    return %arg0, %c0_i32 : i32, i32
  }
  func.func @transform_4(%arg0: i32) -> (i32, i32) {
    %c0_i32 = arith.constant 0 : i32
    %c0_i32_0 = arith.constant 0 : i32
    return %arg0, %c0_i32 : i32, i32
  }
  func.func @transform_5(%arg0: i32) -> (i32, i32, i32) {
    %c0_i32 = arith.constant 0 : i32
    %c0_i32_0 = arith.constant 0 : i32
    %c0_i32_1 = arith.constant 0 : i32
    return %arg0, %c0_i32, %c0_i32_0 : i32, i32, i32
  }
}

</mosaic_0001>

<llo_original>
// kernel: mae3d_criterions_pp_forward.1
$region0: #{mae3d_criterions_pp_forward.1}
  #allocation0 [shape = 'u32[]', space=smem, size = 0x4, offset = 0x4, fixed_abs, tag = 'smem constant byte address 0x4 - core index']
  #allocation1 [shape = 'u32[72,128]{1,0:T(1,128)}', space=vmem, size = 0x9000, scoped, tag = 'internal scratch']
  %s0 = inlined_call_operand.vmem [shape: bf16[32,32], index: 0, kind: input, shape index: {}]
  %s1 = inlined_call_operand.vmem [shape: s32[32,1], index: 1, kind: input, shape index: {}]
  %s2 = inlined_call_operand.vmem [shape: s32[32,1], index: 2, kind: input, shape index: {}]
  %s3 = inlined_call_operand.vmem [shape: bf16[32,3], index: 3, kind: input, shape index: {}]
  %s4 = inlined_call_operand.vmem [shape: f32[32,3], index: 4, kind: input, shape index: {}]
  %s5 = inlined_call_operand.vmem [shape: f32[1,8,128], index: 5, kind: output, shape index: {}]
  %s6 = sld [smem:[#allocation0]]
  $region30: #{mae3d_criterions_pp_forward.1} parent=0
    _
  %s8 = ssub.s32 1, %s6
  %s9 = scalar_select 0, %s8, %s6
  // Predicated region
  $region2: #{mae3d_criterions_pp_forward.1} parent=0 // pred_check
    _
  $region3: #{mae3d_criterions_pp_forward.1} parent=0 // pred_check_branch
    %11 = sbr.rel (0) target = $region5
  $region4: #{mae3d_criterions_pp_forward.1} parent=0 // pred_region
    _
  $region5: #{mae3d_criterions_pp_forward.1} parent=0 // pred_fallthru
    _
  // Predicated region
  $region6: #{mae3d_criterions_pp_forward.1} parent=0 // pred_check
    _
  $region7: #{mae3d_criterions_pp_forward.1} parent=0 // pred_check_branch
    %13 = sbr.rel (0) target = $region9
  $region8: #{mae3d_criterions_pp_forward.1} parent=0 // pred_region
    _
  $region9: #{mae3d_criterions_pp_forward.1} parent=0 // pred_fallthru
    _
  // Predicated region
  $region10: #{mae3d_criterions_pp_forward.1} parent=0 // pred_check
    _
  $region11: #{mae3d_criterions_pp_forward.1} parent=0 // pred_check_branch
    %15 = sbr.rel (0) target = $region13
  $region12: #{mae3d_criterions_pp_forward.1} parent=0 // pred_region
    _
  $region13: #{mae3d_criterions_pp_forward.1} parent=0 // pred_fallthru
    _
  // Predicated region
  $region14: #{mae3d_criterions_pp_forward.1} parent=0 // pred_check
    _
  $region15: #{mae3d_criterions_pp_forward.1} parent=0 // pred_check_branch
    %17 = sbr.rel (0) target = $region17
  $region16: #{mae3d_criterions_pp_forward.1} parent=0 // pred_region
    _
  $region17: #{mae3d_criterions_pp_forward.1} parent=0 // pred_fallthru
    _
  // Predicated region
  $region18: #{mae3d_criterions_pp_forward.1} parent=0 // pred_check
    _
  $region19: #{mae3d_criterions_pp_forward.1} parent=0 // pred_check_branch
    %19 = sbr.rel (0) target = $region21
  $region20: #{mae3d_criterions_pp_forward.1} parent=0 // pred_region
    _
  $region21: #{mae3d_criterions_pp_forward.1} parent=0 // pred_fallthru
    _
  %v20 = vld [vmem:[%s0] sm:$0xf]
  %v21 = vld [vmem:[%s0 + $0x4] sm:$0xf]
  %v22 = vld [vmem:[%s0 + $0x8] sm:$0xf]
  %v23 = vld [vmem:[%s0 + $0xc] sm:$0xf]
  %v24 = vunpack.c.l.bf16 %v20
  %v25 = vunpack.c.l.bf16 %v21
  %v26 = vunpack.c.l.bf16 %v22
  %v27 = vunpack.c.l.bf16 %v23
  %v28 = vld [vmem:[%s1] sm:$0xff]
  %v29 = vld [vmem:[%s1 + $0x8] sm:$0xff]
  %v30 = vld [vmem:[%s1 + $0x10] sm:$0xff]
  %v31 = vld [vmem:[%s1 + $0x18] sm:$0xff]
  %v32 = vld [vmem:[%s2] sm:$0xff]
  %v33 = vld [vmem:[%s2 + $0x8] sm:$0xff]
  %v34 = vld [vmem:[%s2 + $0x10] sm:$0xff]
  %v35 = vld [vmem:[%s2 + $0x18] sm:$0xff]
  %vm36 = vcmp.ne.s32.totalorder %v32, 0
  %vm37 = vcmp.ne.s32.totalorder %v33, 0
  %vm38 = vcmp.ne.s32.totalorder %v34, 0
  %vm39 = vcmp.ne.s32.totalorder %v35, 0
  %v40 = vld [vmem:[%s3] sm:$0xf]
  %v41 = vld [vmem:[%s3 + $0x4] sm:$0xf]
  %v42 = vld [vmem:[%s3 + $0x8] sm:$0xf]
  %v43 = vld [vmem:[%s3 + $0xc] sm:$0xf]
  %v44 = vunpack.c.l.bf16 %v40
  %v45 = vunpack.c.l.bf16 %v41
  %v46 = vunpack.c.l.bf16 %v42
  %v47 = vunpack.c.l.bf16 %v43
  %v48 = vld [vmem:[%s4] sm:$0xff]
  %v49 = vld [vmem:[%s4 + $0x8] sm:$0xff]
  %v50 = vld [vmem:[%s4 + $0x10] sm:$0xff]
  %v51 = vld [vmem:[%s4 + $0x18] sm:$0xff]
  %vm52 = vcmask 261120
  %v53 = vsel %vm52, %v24, -inf
  %54 = vmax.xlane.f32.xlu0 %v53
  %v55 = vpop.xlane.xlu0 %54
  %v56 = vsel %vm52, %v25, -inf
  %57 = vmax.xlane.f32.xlu0 %v56
  %v58 = vpop.xlane.xlu0 %57
  %v59 = vsel %vm52, %v26, -inf
  %60 = vmax.xlane.f32.xlu0 %v59
  %v61 = vpop.xlane.xlu0 %60
  %v62 = vsel %vm52, %v27, -inf
  %63 = vmax.xlane.f32.xlu0 %v62
  %v64 = vpop.xlane.xlu0 %63
  %v65 = vsub.f32 %v24, %v55
  %v66 = vsub.f32 %v25, %v58
  %v67 = vsub.f32 %v26, %v61
  %v68 = vsub.f32 %v27, %v64
  %v69 = vmul.f32 %v65, 1.442695
  %v70 = vpow.pop %v69
  %v71 = vmul.f32 %v66, 1.442695
  %v72 = vpow.pop %v71
  %v73 = vmul.f32 %v67, 1.442695
  %v74 = vpow.pop %v73
  %v75 = vmul.f32 %v68, 1.442695
  %v76 = vpow.pop %v75
  %v77 = vsel %vm52, %v70, 0.0
  %78 = vadd.xlane.f32.xlu0 %v77
  %v79 = vpop.xlane.xlu0 %78
  %v80 = vsel %vm52, %v72, 0.0
  %81 = vadd.xlane.f32.xlu0 %v80
  %v82 = vpop.xlane.xlu0 %81
  %v83 = vsel %vm52, %v74, 0.0
  %84 = vadd.xlane.f32.xlu0 %v83
  %v85 = vpop.xlane.xlu0 %84
  %v86 = vsel %vm52, %v76, 0.0
  %87 = vadd.xlane.f32.xlu0 %v86
  %v88 = vpop.xlane.xlu0 %87
  %v89 = vlog2.pop %v79
  %v90 = vmul.f32 %v89, 0.6931472
  %v91 = vlog2.pop %v82
  %v92 = vmul.f32 %v91, 0.6931472
  %v93 = vlog2.pop %v85
  %v94 = vmul.f32 %v93, 0.6931472
  %v95 = vlog2.pop %v88
  %v96 = vmul.f32 %v95, 0.6931472
  %v97 = vlaneseq
  %v98 = vand.u32 %v97, 127
  %99 = vset.pattern.permute.xlu0 0
  %100 = vperm.xlu0 %99, %v28
  %v101 = vpop.permute.xlu0 %100
  %102 = vset.pattern.permute.xlu0 0
  %103 = vperm.xlu0 %102, %v29
  %v104 = vpop.permute.xlu0 %103
  %105 = vset.pattern.permute.xlu0 0
  %106 = vperm.xlu0 %105, %v30
  %v107 = vpop.permute.xlu0 %106
  %108 = vset.pattern.permute.xlu0 0
  %109 = vperm.xlu0 %108, %v31
  %v110 = vpop.permute.xlu0 %109
  %vm111 = vcmp.eq.s32.totalorder %v98, %v101
  %vm112 = vcmp.eq.s32.totalorder %v98, %v104
  %vm113 = vcmp.eq.s32.totalorder %v98, %v107
  %vm114 = vcmp.eq.s32.totalorder %v98, %v110
  %v115 = vsel %vm111, 1, 0
  %v116 = vsel %vm112, 1, 0
  %v117 = vsel %vm113, 1, 0
  %v118 = vsel %vm114, 1, 0
  %v119 = vcvt.s32.f32 %v115
  %v120 = vcvt.s32.f32 %v116
  %v121 = vcvt.s32.f32 %v117
  %v122 = vcvt.s32.f32 %v118
  %v123 = vmul.f32 %v65, %v119
  %v124 = vmul.f32 %v66, %v120
  %v125 = vmul.f32 %v67, %v121
  %v126 = vmul.f32 %v68, %v122
  %v127 = vsel %vm52, %v123, 0.0
  %128 = vadd.xlane.f32.xlu0 %v127
  %v129 = vpop.xlane.xlu0 %128
  %v130 = vsel %vm52, %v124, 0.0
  %131 = vadd.xlane.f32.xlu0 %v130
  %v132 = vpop.xlane.xlu0 %131
  %v133 = vsel %vm52, %v125, 0.0
  %134 = vadd.xlane.f32.xlu0 %v133
  %v135 = vpop.xlane.xlu0 %134
  %v136 = vsel %vm52, %v126, 0.0
  %137 = vadd.xlane.f32.xlu0 %v136
  %v138 = vpop.xlane.xlu0 %137
  %v139 = vsub.f32 %v129, %v90
  %v140 = vsub.f32 %v132, %v92
  %v141 = vsub.f32 %v135, %v94
  %v142 = vsub.f32 %v138, %v96
  %vm143 = vcmp.ne.s32.totalorder %v28, 0
  %vm144 = vcmp.ne.s32.totalorder %v29, 0
  %vm145 = vcmp.ne.s32.totalorder %v30, 0
  %vm146 = vcmp.ne.s32.totalorder %v31, 0
  %v147 = vsub.f32 0.0, %v139
  %v148 = vsub.f32 0.0, %v140
  %v149 = vsub.f32 0.0, %v141
  %v150 = vsub.f32 0.0, %v142
  %v151 = vsel %vm143, %v147, 0.0
  %v152 = vsel %vm144, %v148, 0.0
  %v153 = vsel %vm145, %v149, 0.0
  %v154 = vsel %vm146, %v150, 0.0
  %vm155 = vcmask 7168
  %v156 = vsel %vm155, %v151, 0.0
  %v157 = vsel %vm155, %v152, 0.0
  %v158 = vadd.f32 %v156, %v157
  %v159 = vsel %vm155, %v153, 0.0
  %v160 = vadd.f32 %v158, %v159
  %v161 = vsel %vm155, %v154, 0.0
  %v162 = vadd.f32 %v160, %v161
  %163 = vadd.xlane.f32.xlu0 %v162
  %v164 = vpop.xlane.xlu0 %163
  %v165 = vrot.slane %v164, 4
  %v166 = vadd.f32 %v164, %v165
  %v167 = vrot.slane %v166, 2
  %v168 = vadd.f32 %v166, %v167
  %v169 = vrot.slane %v168, 1
  %v170 = vadd.f32 %v168, %v169
  %s171 = vtos %v170
  %v172 = vsel %vm143, 1, 0
  %v173 = vsel %vm144, 1, 0
  %v174 = vsel %vm145, 1, 0
  %v175 = vsel %vm146, 1, 0
  %v176 = vcvt.s32.f32 %v172
  %v177 = vcvt.s32.f32 %v173
  %v178 = vcvt.s32.f32 %v174
  %v179 = vcvt.s32.f32 %v175
  %v180 = vsel %vm155, %v176, 0.0
  %v181 = vsel %vm155, %v177, 0.0
  %v182 = vadd.f32 %v180, %v181
  %v183 = vsel %vm155, %v178, 0.0
  %v184 = vadd.f32 %v182, %v183
  %v185 = vsel %vm155, %v179, 0.0
  %v186 = vadd.f32 %v184, %v185
  %187 = vadd.xlane.f32.xlu0 %v186
  %v188 = vpop.xlane.xlu0 %187
  %v189 = vrot.slane %v188, 4
  %v190 = vadd.f32 %v188, %v189
  %v191 = vrot.slane %v190, 2
  %v192 = vadd.f32 %v190, %v191
  %v193 = vrot.slane %v192, 1
  %v194 = vadd.f32 %v192, %v193
  %s195 = vtos %v194
  %v196 = vsub.f32 %v44, %v48
  %v197 = vsub.f32 %v45, %v49
  %v198 = vsub.f32 %v46, %v50
  %v199 = vsub.f32 %v47, %v51
  %v200 = vand.u32 2147483647, %v196
  %v201 = vand.u32 2147483647, %v197
  %v202 = vand.u32 2147483647, %v198
  %v203 = vand.u32 2147483647, %v199
  %v204 = vsel %vm36, 1, 0
  %v205 = vsel %vm37, 1, 0
  %v206 = vsel %vm38, 1, 0
  %v207 = vsel %vm39, 1, 0
  %208 = vset.pattern.permute.xlu0 0
  %209 = vperm.xlu0 %208, %v204
  %v210 = vpop.permute.xlu0 %209
  %211 = vset.pattern.permute.xlu0 0
  %212 = vperm.xlu0 %211, %v205
  %v213 = vpop.permute.xlu0 %212
  %214 = vset.pattern.permute.xlu0 0
  %215 = vperm.xlu0 %214, %v206
  %v216 = vpop.permute.xlu0 %215
  %217 = vset.pattern.permute.xlu0 0
  %218 = vperm.xlu0 %217, %v207
  %v219 = vpop.permute.xlu0 %218
  %vm220 = vcmp.eq.s32.totalorder %v210, 1
  %vm221 = vcmp.eq.s32.totalorder %v213, 1
  %vm222 = vcmp.eq.s32.totalorder %v216, 1
  %vm223 = vcmp.eq.s32.totalorder %v219, 1
  %v224 = vsel %vm220, %v200, 0.0
  %v225 = vsel %vm221, %v201, 0.0
  %v226 = vsel %vm222, %v202, 0.0
  %v227 = vsel %vm223, %v203, 0.0
  %vm228 = vcmask 23552
  %v229 = vsel %vm228, %v224, 0.0
  %v230 = vsel %vm228, %v225, 0.0
  %v231 = vadd.f32 %v229, %v230
  %v232 = vsel %vm228, %v226, 0.0
  %v233 = vadd.f32 %v231, %v232
  %v234 = vsel %vm228, %v227, 0.0
  %v235 = vadd.f32 %v233, %v234
  %236 = vadd.xlane.f32.xlu0 %v235
  %v237 = vpop.xlane.xlu0 %236
  %v238 = vrot.slane %v237, 4
  %v239 = vadd.f32 %v237, %v238
  %v240 = vrot.slane %v239, 2
  %v241 = vadd.f32 %v239, %v240
  %v242 = vrot.slane %v241, 1
  %v243 = vadd.f32 %v241, %v242
  %s244 = vtos %v243
  %v245 = vcvt.s32.f32 %v204
  %v246 = vcvt.s32.f32 %v205
  %v247 = vcvt.s32.f32 %v206
  %v248 = vcvt.s32.f32 %v207
  %v249 = vsel %vm155, %v245, 0.0
  %v250 = vsel %vm155, %v246, 0.0
  %v251 = vadd.f32 %v249, %v250
  %v252 = vsel %vm155, %v247, 0.0
  %v253 = vadd.f32 %v251, %v252
  %v254 = vsel %vm155, %v248, 0.0
  %v255 = vadd.f32 %v253, %v254
  %256 = vadd.xlane.f32.xlu0 %v255
  %v257 = vpop.xlane.xlu0 %256
  %v258 = vrot.slane %v257, 4
  %v259 = vadd.f32 %v257, %v258
  %v260 = vrot.slane %v259, 2
  %v261 = vadd.f32 %v259, %v260
  %v262 = vrot.slane %v261, 1
  %v263 = vadd.f32 %v261, %v262
  %s264 = vtos %v263
  %v265 = vlaneseq
  %v266 = vshrl.u32 %v265, 7
  %vm267 = vcmp.eq.s32.totalorder %v266, 0
  %vm268 = vcmp.eq.s32.totalorder %v266, 1
  %vm269 = vcmp.eq.s32.totalorder %v266, 2
  %v270 = vstv %s244
  %v271 = vstv %s264
  %v272 = vsel %vm269, %v270, %v271
  %v273 = vstv %s195
  %v274 = vsel %vm268, %v273, %v272
  %v275 = vstv %s171
  %v276 = vsel %vm267, %v275, %v274
  %277 = vst [vmem:[%s5] sm:$0xff] %v276
  // Predicated region
  $region22: #{mae3d_criterions_pp_forward.1} parent=0 // pred_check
    _
  $region23: #{mae3d_criterions_pp_forward.1} parent=0 // pred_check_branch
    %279 = sbr.rel (0) target = $region25
  $region24: #{mae3d_criterions_pp_forward.1} parent=0 // pred_region
    _
  $region25: #{mae3d_criterions_pp_forward.1} parent=0 // pred_fallthru
    _
  // Predicated region
  $region26: #{mae3d_criterions_pp_forward.1} parent=0 // pred_check
    _
  $region27: #{mae3d_criterions_pp_forward.1} parent=0 // pred_check_branch
    %281 = sbr.rel (0) target = $region29
  $region28: #{mae3d_criterions_pp_forward.1} parent=0 // pred_region
    _
  $region29: #{mae3d_criterions_pp_forward.1} parent=0 // pred_fallthru
    _

</llo_original>
